<compile_context>
chip_gen: v7x
topology: tpu7x:2x2x1
jax: 0.10.0
libtpu: 0.0.40
codegen_flags: <defaults>
</compile_context>

<pallas_src>
import functools

import numpy as np
import jax
import jax.numpy as jnp
from jax import lax
from jax.experimental import pallas as pl
from jax.experimental.pallas import tpu as pltpu

LEAKY_SLOPE = 0.01  # nn.LeakyReLU() default negative_slope


# ----------------------------------------------------------------------------
# Fused kernel: 3x3 conv (+folded BN) + LeakyReLU + 1x1 conv (+bias) +
# YOLO eval transform.  One batch element per grid step.
# ----------------------------------------------------------------------------
def _yolo_head_kernel(x_ref, w3_ref, b3_ref, w1_ref, meta_ref, o_ref,
                      *, H, W, Cin, C1, Ct, training):
    # Layouts (all lane-dense, per batch element):
    #   x_ref    : (1, H, W*Cin)
    #   w3_ref   : (3*W*Cin, W*C1)   Toeplitz-expanded 3x3 weights (BN folded)
    #   b3_ref   : (1, W*C1)         folded BN shift, tiled per lane
    #   w1_ref   : (W*C1, W*Ct)      block-diagonal 1x1 conv weights
    #   meta_ref : (5, W*Ct)         [bias1, is_wh, sig_mul, add, exp_mul]
    #   o_ref    : (1, H, W*Ct)
    WCin = W * Cin
    xt = x_ref[0]                                        # (H, W*Cin)

    # 1-row zero halo built in VMEM (no HBM pad); column halo lives in w3.
    zrow = jnp.zeros((1, WCin), jnp.float32)
    xp = jnp.concatenate([zrow, xt, zrow], axis=0)       # (H+2, W*Cin)
    # three row-shifted views side by side -> one matmul covers all 9 taps
    xrows = jnp.concatenate([xp[0:H], xp[1:H + 1], xp[2:H + 2]],
                            axis=1)                      # (H, 3*W*Cin)

    y = jnp.dot(xrows, w3_ref[...], preferred_element_type=jnp.float32)
    y = y + b3_ref[0:1, :]                               # eval BatchNorm (folded)
    y = jnp.where(y >= 0, y, LEAKY_SLOPE * y)            # LeakyReLU

    z = jnp.dot(y, w1_ref[...], preferred_element_type=jnp.float32)
    z = z + meta_ref[0:1, :]                             # 1x1 conv bias

    if training:
        o_ref[...] = z.reshape(1, H, W * Ct)
        return

    is_wh = meta_ref[1:2, :]       # 1.0 on w/h channels, else 0.0
    sig_mul = meta_ref[2:3, :]     # stride on x/y channels, 1.0 on obj/cls
    add = meta_ref[3:4, :]         # grid offset * stride on x/y, else 0.0
    exp_mul = meta_ref[4:5, :]     # scaled_anchor*stride on w/h, 1.0 elsewhere

    e = jnp.exp(-z)                                      # single exp / element
    sig = pl.reciprocal(1.0 + e, approx=False)           # sigmoid(z)
    ex = pl.reciprocal(e, approx=False)                  # exp(z)
    out = jnp.where(is_wh > 0.5, ex * exp_mul, sig * sig_mul + add)
    o_ref[...] = out.reshape(1, H, W * Ct)


# ----------------------------------------------------------------------------
# YOLOLayer (Pallas) — parameters generated deterministically in __init__.
# ----------------------------------------------------------------------------
class YOLOLayerPallas:
    def __init__(self, key, in_channels, anchors, num_classes, image_size=416):
        self.Cin = in_channels
        self.A = len(anchors)
        self.NC = num_classes
        self.anchors = anchors
        self.image_size = image_size
        self.C1 = in_channels * 2
        self.Ct = self.A * (5 + num_classes)
        C1, Ct = self.C1, self.Ct

        k1, k2, k3, k4, k5, k6, k7 = jax.random.split(key, 7)
        self.w3 = 0.1 * jax.random.normal(k1, (3, 3, in_channels, C1), jnp.float32)
        gamma = 1.0 + 0.1 * jax.random.normal(k2, (C1,), jnp.float32)
        beta = 0.1 * jax.random.normal(k3, (C1,), jnp.float32)
        mean = 0.1 * jax.random.normal(k4, (C1,), jnp.float32)
        var = 1.0 + 0.1 * jnp.abs(jax.random.normal(k5, (C1,), jnp.float32))
        eps = 1e-5
        self.bn_scale = gamma / jnp.sqrt(var + eps)
        self.bn_shift = beta - mean * self.bn_scale
        self.w1 = 0.1 * jax.random.normal(k6, (C1, Ct), jnp.float32)
        self.b1 = 0.05 * jax.random.normal(k7, (Ct,), jnp.float32)

        # host copies used once to build the lane-expanded operands
        self._w3_np = np.asarray(self.w3)
        self._bn_scale_np = np.asarray(self.bn_scale)
        self._bn_shift_np = np.asarray(self.bn_shift)
        self._w1_np = np.asarray(self.w1)
        self._b1_np = np.asarray(self.b1)
        self._cache = {}

    def _operands(self, H, W):
        key = (H, W)
        if key in self._cache:
            return self._cache[key]
        Cin, C1, NC, Ct = self.Cin, self.C1, self.NC, self.Ct
        stride = self.image_size // H                    # compute_grid_offsets

        # 3x3 conv (BN scale folded in) as a Toeplitz matrix over the lane axis.
        w3f = self._w3_np * self._bn_scale_np[None, None, None, :]  # (3,3,Cin,C1)
        Wt3 = np.zeros((3 * W * Cin, W * C1), np.float32)
        for dy in range(3):
            for dx in range(3):
                for w in range(W):
                    ws = w + dx - 1                      # source column (pad=1)
                    if 0 <= ws < W:
                        r0 = dy * W * Cin + ws * Cin
                        Wt3[r0:r0 + Cin, w * C1:(w + 1) * C1] = w3f[dy, dx]
        b3row = np.tile(self._bn_shift_np, W).reshape(1, W * C1)

        # 1x1 conv as a block-diagonal matrix over the lane axis.
        Wt1 = np.zeros((W * C1, W * Ct), np.float32)
        for w in range(W):
            Wt1[w * C1:(w + 1) * C1, w * Ct:(w + 1) * Ct] = self._w1_np

        # Per-lane metadata, lane = w*Ct + a*(5+NC) + k.
        L = W * Ct
        lane = np.arange(L)
        k = lane % (5 + NC)
        a_idx = (lane % Ct) // (5 + NC)
        col = (lane // Ct).astype(np.float32)            # grid column index
        scaled = np.asarray(self.anchors, np.float32) / stride
        bias1 = np.tile(self._b1_np, W)
        is_wh = ((k == 2) | (k == 3)).astype(np.float32)
        sig_mul = np.where(k < 2, float(stride), 1.0).astype(np.float32)
        # NOTE: the reference builds grid_y identically to grid_x, so BOTH the
        # x and y channels add the COLUMN index (quirk reproduced).
        add = np.where(k < 2, col * float(stride), 0.0).astype(np.float32)
        exp_mul = np.ones(L, np.float32)                 # keep 1.0 (not 0) off w/h
        exp_mul = np.where(k == 2, scaled[a_idx, 0] * stride, exp_mul)
        exp_mul = np.where(k == 3, scaled[a_idx, 1] * stride, exp_mul)
        meta = np.stack([bias1, is_wh, sig_mul, add, exp_mul]).astype(np.float32)

        ops = (jnp.asarray(Wt3), jnp.asarray(b3row), jnp.asarray(Wt1),
               jnp.asarray(meta))
        self._cache[key] = ops
        return ops

    def __call__(self, x_nhwc, training=False):
        B, H, W, Cin = x_nhwc.shape
        assert Cin == self.Cin and H == W
        C1, Ct, A, NC = self.C1, self.Ct, self.A, self.NC
        Wt3, b3row, Wt1, meta = self._operands(H, W)

        x_lane = x_nhwc.reshape(B, H, W * Cin)           # layout-identical reshape
        kern = functools.partial(_yolo_head_kernel, H=H, W=W, Cin=Cin,
                                 C1=C1, Ct=Ct, training=training)
        out = pl.pallas_call(
            kern,
            out_shape=jax.ShapeDtypeStruct((B, H, W * Ct), jnp.float32),
            grid=(B,),
            in_specs=[
                pl.BlockSpec((1, H, W * Cin), lambda b: (b, 0, 0)),
                pl.BlockSpec((3 * W * Cin, W * C1), lambda b: (0, 0)),
                pl.BlockSpec((1, W * C1), lambda b: (0, 0)),
                pl.BlockSpec((W * C1, W * Ct), lambda b: (0, 0)),
                pl.BlockSpec((5, W * Ct), lambda b: (0, 0)),
            ],
            out_specs=pl.BlockSpec((1, H, W * Ct), lambda b: (b, 0, 0)),
            compiler_params=pltpu.CompilerParams(
                dimension_semantics=("parallel",)),
        )(x_lane, Wt3, b3row, Wt1, meta)

        # (B,H,W,A,5+NC) -> (B,A,H,W,5+NC): matches torch view+permute ordering
        out = out.reshape(B, H, W, A, 5 + NC).transpose(0, 3, 1, 2, 4)
        if training:
            return out                                   # (B, A, G, G, 5+NC)
        return out.reshape(B, A * H * W, 5 + NC)         # eval format


# ----------------------------------------------------------------------------
# Concrete YOLOModelInterface: three heads at three spatial scales.
# ----------------------------------------------------------------------------
def _avgpool2(x_nhwc):
    B, H, W, C = x_nhwc.shape
    return x_nhwc.reshape(B, H // 2, 2, W // 2, 2, C).mean(axis=(2, 4))


class YOLOModelPallas:
    def __init__(self, key, in_channels=4, num_classes=3, image_size=416):
        k1, k2, k3 = jax.random.split(key, 3)
        self.yolo_1 = YOLOLayerPallas(k1, in_channels,
                                      [(10, 13), (16, 30), (33, 23)],
                                      num_classes, image_size)
        self.yolo_2 = YOLOLayerPallas(k2, in_channels,
                                      [(30, 61), (62, 45), (59, 119)],
                                      num_classes, image_size)
        self.yolo_3 = YOLOLayerPallas(k3, in_channels,
                                      [(116, 90), (156, 198), (373, 326)],
                                      num_classes, image_size)

    def __call__(self, x_nchw, training=False):
        # TODO(synk): the abstract interface leaves the backbone unspecified;
        # three feature maps are derived by average pooling so each head runs
        # at its own scale.
        x = jnp.transpose(x_nchw, (0, 2, 3, 1))          # NCHW -> NHWC
        f1 = x
        f2 = _avgpool2(f1)
        f3 = _avgpool2(f2)
        return (self.yolo_1(f1, training),
                self.yolo_2(f2, training),
                self.yolo_3(f3, training))


# ----------------------------------------------------------------------------
# Pure-JAX reference for verification.
# ----------------------------------------------------------------------------
def _yolo_layer_ref(layer, x_nhwc):
    y = lax.conv_general_dilated(x_nhwc, layer.w3, (1, 1), "SAME",
                                 dimension_numbers=("NHWC", "HWIO", "NHWC"))
    y = y * layer.bn_scale + layer.bn_shift
    y = jnp.where(y >= 0, y, LEAKY_SLOPE * y)
    z = jnp.einsum("bhwc,cd->bhwd", y, layer.w1) + layer.b1

    B, H, W, _ = x_nhwc.shape
    A, NC = layer.A, layer.NC
    p = z.reshape(B, H, W, A, 5 + NC).transpose(0, 3, 1, 2, 4)  # (B,A,G,G,5+NC)
    G = H
    stride = layer.image_size // G
    grid_x = jnp.arange(G, dtype=jnp.float32).reshape(1, 1, 1, G)
    grid_y = grid_x                                      # reference quirk reproduced
    scaled = jnp.asarray(layer.anchors, jnp.float32) / stride
    aw = scaled[:, 0].reshape(1, A, 1, 1)
    ah = scaled[:, 1].reshape(1, A, 1, 1)

    bx = jax.nn.sigmoid(p[..., 0]) + grid_x
    by = jax.nn.sigmoid(p[..., 1]) + grid_y
    bw = jnp.exp(p[..., 2]) * aw
    bh = jnp.exp(p[..., 3]) * ah
    bboxes = jnp.stack([bx, by, bw, bh], axis=-1) * stride
    obj = jax.nn.sigmoid(p[..., 4:5])
    cls = jax.nn.sigmoid(p[..., 5:])
    return jnp.concatenate([bboxes.reshape(B, -1, 4),
                            obj.reshape(B, -1, 1),
                            cls.reshape(B, -1, NC)], axis=-1)


if __name__ == "__main__":
    key = jax.random.PRNGKey(0)
    k_model, k_x = jax.random.split(key)

    B, Cin, H, W = 2, 4, 16, 16
    x = jax.random.normal(k_x, (B, Cin, H, W), jnp.float32)   # PyTorch NCHW input

    model = YOLOModelPallas(k_model, in_channels=Cin, num_classes=3, image_size=416)

    outs = model(x, training=False)
    outs = jax.block_until_ready(outs)

    # verify against plain-JAX reference
    x_nhwc = jnp.transpose(x, (0, 2, 3, 1))
    feats = [x_nhwc, _avgpool2(x_nhwc), _avgpool2(_avgpool2(x_nhwc))]
    layers = [model.yolo_1, model.yolo_2, model.yolo_3]
    for out, layer, feat in zip(outs, layers, feats):
        ref = _yolo_layer_ref(layer, feat)
        np.testing.assert_allclose(np.asarray(out), np.asarray(ref),
                                   rtol=2e-4, atol=2e-4)

    print("KERNEL_OK")
</pallas_src>

<mosaic_0001>
module attributes {stable_mosaic.version = 11 : i64} {
  func.func @_yolo_head_kernel(%arg0: i32, %arg1: memref<1x16x64xf32, #tpu.memory_space<vmem>>, %arg2: memref<192x128xf32, #tpu.memory_space<vmem>>, %arg3: memref<1x128xf32, #tpu.memory_space<vmem>>, %arg4: memref<128x384xf32, #tpu.memory_space<vmem>>, %arg5: memref<5x384xf32, #tpu.memory_space<vmem>>, %arg6: memref<1x16x384xf32, #tpu.memory_space<vmem>>) attributes {dimension_semantics = [#tpu.dimension_semantics<parallel>], iteration_bounds = array<i64: 2>, scalar_prefetch = 0 : i64, scratch_operands = 0 : i64, tpu.core_type = #tpu.core_type<tc>, window_params = [{transform_indices = @transform_0, window_bounds = array<i64: 1, 16, 64>}, {pipeline_mode = #tpu.pipeline_mode<synchronous>, transform_indices = @transform_1, window_bounds = array<i64: 192, 128>}, {pipeline_mode = #tpu.pipeline_mode<synchronous>, transform_indices = @transform_2, window_bounds = array<i64: 1, 128>}, {pipeline_mode = #tpu.pipeline_mode<synchronous>, transform_indices = @transform_3, window_bounds = array<i64: 128, 384>}, {pipeline_mode = #tpu.pipeline_mode<synchronous>, transform_indices = @transform_4, window_bounds = array<i64: 5, 384>}, {transform_indices = @transform_5, window_bounds = array<i64: 1, 16, 384>}]} {
    %c0 = arith.constant 0 : index
    %c0_0 = arith.constant 0 : index
    %c0_1 = arith.constant 0 : index
    %0 = vector.load %arg1[%c0, %c0_0, %c0_1] : memref<1x16x64xf32, #tpu.memory_space<vmem>>, vector<1x16x64xf32>
    %1 = vector.shape_cast %0 : vector<1x16x64xf32> to vector<16x64xf32>
    %cst = arith.constant 0.000000e+00 : f32
    %2 = vector.broadcast %cst : f32 to vector<1x64xf32>
    %3 = tpu.concatenate %2, %1, %2 in 0 : vector<1x64xf32>, vector<16x64xf32>, vector<1x64xf32> -> vector<18x64xf32>
    %4 = vector.extract_strided_slice %3 {offsets = [0, 0], sizes = [16, 64], strides = [1, 1]} : vector<18x64xf32> to vector<16x64xf32>
    %5 = vector.extract_strided_slice %3 {offsets = [1, 0], sizes = [16, 64], strides = [1, 1]} : vector<18x64xf32> to vector<16x64xf32>
    %6 = vector.extract_strided_slice %3 {offsets = [2, 0], sizes = [16, 64], strides = [1, 1]} : vector<18x64xf32> to vector<16x64xf32>
    %7 = tpu.concatenate %4, %5, %6 in 1 : vector<16x64xf32>, vector<16x64xf32>, vector<16x64xf32> -> vector<16x192xf32>
    %c0_2 = arith.constant 0 : index
    %c0_3 = arith.constant 0 : index
    %8 = vector.load %arg2[%c0_2, %c0_3] : memref<192x128xf32, #tpu.memory_space<vmem>>, vector<192x128xf32>
    %cst_4 = arith.constant dense<0.000000e+00> : vector<16x128xf32>
    %9 = tpu.matmul %7, %8, %cst_4 {dimension_numbers = #tpu.dot_dimension_numbers<[1], [0], [0], [1], [0, 0, 1, 1], [], []>} : vector<16x192xf32>, vector<192x128xf32>, vector<16x128xf32> -> vector<16x128xf32>
    %c0_5 = arith.constant 0 : index
    %c0_6 = arith.constant 0 : index
    %10 = vector.load %arg3[%c0_5, %c0_6] : memref<1x128xf32, #tpu.memory_space<vmem>>, vector<1x128xf32>
    %11 = vector.broadcast %10 : vector<1x128xf32> to vector<16x128xf32>
    %12 = arith.addf %9, %11 : vector<16x128xf32>
    %cst_7 = arith.constant 0.000000e+00 : f32
    %13 = vector.broadcast %cst_7 : f32 to vector<16x128xf32>
    %14 = arith.cmpf oge, %12, %13 : vector<16x128xf32>
    %cst_8 = arith.constant 0.00999999977 : f32
    %15 = vector.broadcast %cst_8 : f32 to vector<16x128xf32>
    %16 = arith.mulf %15, %12 : vector<16x128xf32>
    %17 = arith.select %14, %12, %16 : vector<16x128xi1>, vector<16x128xf32>
    %c0_9 = arith.constant 0 : index
    %c0_10 = arith.constant 0 : index
    %18 = vector.load %arg4[%c0_9, %c0_10] : memref<128x384xf32, #tpu.memory_space<vmem>>, vector<128x384xf32>
    %cst_11 = arith.constant dense<0.000000e+00> : vector<16x384xf32>
    %19 = tpu.matmul %17, %18, %cst_11 {dimension_numbers = #tpu.dot_dimension_numbers<[1], [0], [0], [1], [0, 0, 1, 1], [], []>} : vector<16x128xf32>, vector<128x384xf32>, vector<16x384xf32> -> vector<16x384xf32>
    %c0_12 = arith.constant 0 : index
    %c0_13 = arith.constant 0 : index
    %20 = vector.load %arg5[%c0_12, %c0_13] : memref<5x384xf32, #tpu.memory_space<vmem>>, vector<1x384xf32>
    %21 = vector.broadcast %20 : vector<1x384xf32> to vector<16x384xf32>
    %22 = arith.addf %19, %21 : vector<16x384xf32>
    %c1 = arith.constant 1 : index
    %c0_14 = arith.constant 0 : index
    %23 = vector.load %arg5[%c1, %c0_14] : memref<5x384xf32, #tpu.memory_space<vmem>>, vector<1x384xf32>
    %c2 = arith.constant 2 : index
    %c0_15 = arith.constant 0 : index
    %24 = vector.load %arg5[%c2, %c0_15] : memref<5x384xf32, #tpu.memory_space<vmem>>, vector<1x384xf32>
    %c3 = arith.constant 3 : index
    %c0_16 = arith.constant 0 : index
    %25 = vector.load %arg5[%c3, %c0_16] : memref<5x384xf32, #tpu.memory_space<vmem>>, vector<1x384xf32>
    %c4 = arith.constant 4 : index
    %c0_17 = arith.constant 0 : index
    %26 = vector.load %arg5[%c4, %c0_17] : memref<5x384xf32, #tpu.memory_space<vmem>>, vector<1x384xf32>
    %cst_18 = arith.constant 0.000000e+00 : f32
    %27 = vector.broadcast %cst_18 : f32 to vector<16x384xf32>
    %28 = arith.subf %27, %22 : vector<16x384xf32>
    %29 = math.exp %28 : vector<16x384xf32>
    %cst_19 = arith.constant 1.000000e+00 : f32
    %30 = vector.broadcast %cst_19 : f32 to vector<16x384xf32>
    %31 = arith.addf %30, %29 : vector<16x384xf32>
    %32 = tpu.reciprocal %31 : vector<16x384xf32> -> vector<16x384xf32>
    %33 = tpu.reciprocal %29 : vector<16x384xf32> -> vector<16x384xf32>
    %cst_20 = arith.constant 5.000000e-01 : f32
    %34 = vector.broadcast %cst_20 : f32 to vector<1x384xf32>
    %35 = arith.cmpf ogt, %23, %34 : vector<1x384xf32>
    %36 = vector.broadcast %26 : vector<1x384xf32> to vector<16x384xf32>
    %37 = arith.mulf %33, %36 : vector<16x384xf32>
    %38 = vector.broadcast %24 : vector<1x384xf32> to vector<16x384xf32>
    %39 = arith.mulf %32, %38 : vector<16x384xf32>
    %40 = vector.broadcast %25 : vector<1x384xf32> to vector<16x384xf32>
    %41 = arith.addf %39, %40 : vector<16x384xf32>
    %42 = vector.shape_cast %35 : vector<1x384xi1> to vector<1x384xi1>
    %43 = vector.broadcast %42 : vector<1x384xi1> to vector<16x384xi1>
    %44 = arith.select %43, %37, %41 : vector<16x384xi1>, vector<16x384xf32>
    %45 = vector.shape_cast %44 : vector<16x384xf32> to vector<1x16x384xf32>
    %c0_21 = arith.constant 0 : index
    %c0_22 = arith.constant 0 : index
    %c0_23 = arith.constant 0 : index
    %46 = vector.load %arg6[%c0_21, %c0_22, %c0_23] : memref<1x16x384xf32, #tpu.memory_space<vmem>>, vector<1x16x384xf32>
    tpu.vector_store %arg6[%c0_21, %c0_22, %c0_23], %45 {strides = array<i32>} : memref<1x16x384xf32, #tpu.memory_space<vmem>>, vector<1x16x384xf32>,
    return
  }
  func.func @transform_0(%arg0: i32) -> (i32, i32, i32) {
    %c0_i32 = arith.constant 0 : i32
    %c0_i32_0 = arith.constant 0 : i32
    %c0_i32_1 = arith.constant 0 : i32
    return %arg0, %c0_i32, %c0_i32_0 : i32, i32, i32
  }
  func.func @transform_1(%arg0: i32) -> (i32, i32) {
    %c0_i32 = arith.constant 0 : i32
    %c0_i32_0 = arith.constant 0 : i32
    %c0_i32_1 = arith.constant 0 : i32
    return %c0_i32, %c0_i32_0 : i32, i32
  }
  func.func @transform_2(%arg0: i32) -> (i32, i32) {
    %c0_i32 = arith.constant 0 : i32
    %c0_i32_0 = arith.constant 0 : i32
    %c0_i32_1 = arith.constant 0 : i32
    return %c0_i32, %c0_i32_0 : i32, i32
  }
  func.func @transform_3(%arg0: i32) -> (i32, i32) {
    %c0_i32 = arith.constant 0 : i32
    %c0_i32_0 = arith.constant 0 : i32
    %c0_i32_1 = arith.constant 0 : i32
    return %c0_i32, %c0_i32_0 : i32, i32
  }
  func.func @transform_4(%arg0: i32) -> (i32, i32) {
    %c0_i32 = arith.constant 0 : i32
    %c0_i32_0 = arith.constant 0 : i32
    %c0_i32_1 = arith.constant 0 : i32
    return %c0_i32, %c0_i32_0 : i32, i32
  }
  func.func @transform_5(%arg0: i32) -> (i32, i32, i32) {
    %c0_i32 = arith.constant 0 : i32
    %c0_i32_0 = arith.constant 0 : i32
    %c0_i32_1 = arith.constant 0 : i32
    return %arg0, %c0_i32, %c0_i32_0 : i32, i32, i32
  }
}

</mosaic_0001>

<llo_original>
// kernel: tpu_custom_call.1
$region0: #{tpu_custom_call.1}
  #allocation0 [shape = 'u32[]', space=smem, size = 0x4, offset = 0x4, fixed_abs, tag = 'smem constant byte address 0x4 - core index']
  #allocation1 [shape = 'u32[144,128]{1,0:T(1,128)}', space=vmem, size = 0x12000, scoped, tag = 'internal scratch']
  %s0 = inlined_call_operand.hbm [shape: f32[2,16,64], index: 0, kind: input, shape index: {}]
  %s1 = inlined_call_operand.hbm [shape: f32[192,128], index: 1, kind: input, shape index: {}]
  %s2 = inlined_call_operand.vmem [shape: f32[1,128], index: 2, kind: input, shape index: {}]
  %s3 = inlined_call_operand.hbm [shape: f32[128,384], index: 3, kind: input, shape index: {}]
  %s4 = inlined_call_operand.hbm [shape: f32[5,384], index: 4, kind: input, shape index: {}]
  %s5 = inlined_call_operand.hbm [shape: f32[2,16,384], index: 5, kind: output, shape index: {}]
  %s6 = sld [smem:[#allocation0]]
  $region69: #{tpu_custom_call.1} parent=0
    _
  %s8 = ssub.s32 1, %s6
  %s9 = scalar_select 0, %s8, %s6
  $region1: #{tpu_custom_call.1} parent=0
    #allocation2 [shape = 'u8[16384]{0}', space=vmem, size = 0x4000, scoped, tag = 'input window, operand 0']
    #allocation3 [shape = 's32[2]{0}', space=sflag, size = 0x8, scoped, tag = 'scoped memory for tpu_custom_call.1']
    #allocation4 [shape = 's32[2]{0}', space=sflag, size = 0x8, scoped, tag = 'scoped memory for tpu_custom_call.1']
    #allocation5 [shape = 'u8[98304]{0}', space=vmem, size = 0x18000, scoped, tag = 'input window, operand 1, single buffered']
    #allocation6 [shape = 's32[1]{0}', space=sflag, size = 0x4, scoped, tag = 'scoped memory for tpu_custom_call.1']
    #allocation7 [shape = 'u8[196608]{0}', space=vmem, size = 0x30000, scoped, tag = 'input window, operand 3, single buffered']
    #allocation8 [shape = 'u8[12288]{0}', space=vmem, size = 0x3000, scoped, tag = 'input window, operand 4, single buffered']
    #allocation9 [shape = 's32[1]{0}', space=sflag, size = 0x4, scoped, tag = 'scoped memory for tpu_custom_call.1']
    #allocation10 [shape = 'u8[49152]{0}', space=vmem, size = 0xc000, scoped, tag = 'output window, operand 0']
    %10 = vsyncpa [#allocation3], 0
    %s11 = scalar_lea.sflag [#allocation3], 1
    %12 = vsyncpa %s11, 0
    %13 = vsyncpa [#allocation6], 0
    %14 = vsyncpa [#allocation9], 0
    %15 = vsyncpa [#allocation4], 0
    %s16 = scalar_lea.sflag [#allocation4], 1
    %17 = vsyncpa %s16, 0
    loop: start=0, step=1, limit=4
    $region2: #{tpu_custom_call.1} parent=1 // loop_pre_header
      _
    $region3: #{tpu_custom_call.1} parent=1 // loop_header
      %s19 = sphi 0, %s23
      %p20 = scmp.ge.s32.totalorder %s19, 4
      %s29 = sphi 0, %s31
      %s32 = sphi 0, %s29
      %s33 = sphi 0, %s32
      %s49 = sphi 0, %s33
      %s53 = sphi 0, %s53
      %s55 = sphi 0, %s53
      %s56 = sphi 0, %s55
      %s70 = sphi 0, %s56
      %s74 = sphi 0, %s74
      %s76 = sphi 0, %s74
      %s77 = sphi 0, %s76
      %s91 = sphi 0, %s77
      %s95 = sphi 0, %s95
      %s97 = sphi 0, %s95
      %s98 = sphi 0, %s97
      %s112 = sphi 0, %s98
      %s116 = sphi 0, %s116
      %s118 = sphi 0, %s116
      %s119 = sphi 0, %s118
      %s133 = sphi 0, %s119
      %s139 = sphi 0, %s141
      %s142 = sphi 0, %s139
      %s143 = sphi 0, %s142
      %s159 = sphi 0, %s143
    $region4: #{tpu_custom_call.1} parent=1 // loop_header_branch
      %22 = sbr.rel (%p20) target = $region8
    $region5: #{tpu_custom_call.1} parent=1 // loop_body
      %s24 = ssub.s32 %s19, 1
      %s25 = ssub.s32 %s19, 2
      %s26 = sadd.s32 %s19, 1
      %s27 = ssub.s32 %s19, %s26
      %p28 = scmp.eq.s32.totalorder %s27, 0
      %s30 = sadd.s32 %s29, 1
      %s31 = scalar_select %p28, %s29, %s30
      %p34 = pneg %p28
      %p35 = scmp.eq.s32.totalorder %s19, 1
      %p36 = por %p34, %p35
      %p37 = scmp.ne.s32.totalorder %s29, %s32
      %p38 = scmp.eq.s32.totalorder %s19, 0
      %p39 = por %p37, %p38
      %p40 = scmp.ne.s32.totalorder %s29, %s32
      %p41 = scmp.eq.s32.totalorder %s24, 1
      %p42 = por %p40, %p41
      %p43 = scmp.ne.s32.totalorder %s32, %s33
      %p44 = scmp.eq.s32.totalorder %s24, 0
      %p45 = por %p43, %p44
      %p46 = scmp.ne.s32.totalorder %s32, %s33
      %p47 = scmp.eq.s32.totalorder %s25, 1
      %p48 = por %p46, %p47
      %p50 = scmp.ne.s32.totalorder %s33, %s49
      %p51 = scmp.eq.s32.totalorder %s25, 0
      %p52 = por %p50, %p51
      %s54 = sadd.s32 %s53, 1
      %p57 = scmp.eq.s32.totalorder %s19, 1
      %p58 = scmp.ne.s32.totalorder %s53, %s55
      %p59 = scmp.eq.s32.totalorder %s19, 0
      %p60 = por %p58, %p59
      %p61 = scmp.ne.s32.totalorder %s53, %s55
      %p62 = scmp.eq.s32.totalorder %s24, 1
      %p63 = por %p61, %p62
      %p64 = scmp.ne.s32.totalorder %s55, %s56
      %p65 = scmp.eq.s32.totalorder %s24, 0
      %p66 = por %p64, %p65
      %p67 = scmp.ne.s32.totalorder %s55, %s56
      %p68 = scmp.eq.s32.totalorder %s25, 1
      %p69 = por %p67, %p68
      %p71 = scmp.ne.s32.totalorder %s56, %s70
      %p72 = scmp.eq.s32.totalorder %s25, 0
      %p73 = por %p71, %p72
      %s75 = sadd.s32 %s74, 1
      %p78 = scmp.eq.s32.totalorder %s19, 1
      %p79 = scmp.ne.s32.totalorder %s74, %s76
      %p80 = scmp.eq.s32.totalorder %s19, 0
      %p81 = por %p79, %p80
      %p82 = scmp.ne.s32.totalorder %s74, %s76
      %p83 = scmp.eq.s32.totalorder %s24, 1
      %p84 = por %p82, %p83
      %p85 = scmp.ne.s32.totalorder %s76, %s77
      %p86 = scmp.eq.s32.totalorder %s24, 0
      %p87 = por %p85, %p86
      %p88 = scmp.ne.s32.totalorder %s76, %s77
      %p89 = scmp.eq.s32.totalorder %s25, 1
      %p90 = por %p88, %p89
      %p92 = scmp.ne.s32.totalorder %s77, %s91
      %p93 = scmp.eq.s32.totalorder %s25, 0
      %p94 = por %p92, %p93
      %s96 = sadd.s32 %s95, 1
      %p99 = scmp.eq.s32.totalorder %s19, 1
      %p100 = scmp.ne.s32.totalorder %s95, %s97
      %p101 = scmp.eq.s32.totalorder %s19, 0
      %p102 = por %p100, %p101
      %p103 = scmp.ne.s32.totalorder %s95, %s97
      %p104 = scmp.eq.s32.totalorder %s24, 1
      %p105 = por %p103, %p104
      %p106 = scmp.ne.s32.totalorder %s97, %s98
      %p107 = scmp.eq.s32.totalorder %s24, 0
      %p108 = por %p106, %p107
      %p109 = scmp.ne.s32.totalorder %s97, %s98
      %p110 = scmp.eq.s32.totalorder %s25, 1
      %p111 = por %p109, %p110
      %p113 = scmp.ne.s32.totalorder %s98, %s112
      %p114 = scmp.eq.s32.totalorder %s25, 0
      %p115 = por %p113, %p114
      %s117 = sadd.s32 %s116, 1
      %p120 = scmp.eq.s32.totalorder %s19, 1
      %p121 = scmp.ne.s32.totalorder %s116, %s118
      %p122 = scmp.eq.s32.totalorder %s19, 0
      %p123 = por %p121, %p122
      %p124 = scmp.ne.s32.totalorder %s116, %s118
      %p125 = scmp.eq.s32.totalorder %s24, 1
      %p126 = por %p124, %p125
      %p127 = scmp.ne.s32.totalorder %s118, %s119
      %p128 = scmp.eq.s32.totalorder %s24, 0
      %p129 = por %p127, %p128
      %p130 = scmp.ne.s32.totalorder %s118, %s119
      %p131 = scmp.eq.s32.totalorder %s25, 1
      %p132 = por %p130, %p131
      %p134 = scmp.ne.s32.totalorder %s119, %s133
      %p135 = scmp.eq.s32.totalorder %s25, 0
      %p136 = por %p134, %p135
      %s137 = ssub.s32 %s19, %s26
      %p138 = scmp.eq.s32.totalorder %s137, 0
      %s140 = sadd.s32 %s139, 1
      %s141 = scalar_select %p138, %s139, %s140
      %p144 = pneg %p138
      %p145 = scmp.eq.s32.totalorder %s19, 1
      %p146 = por %p144, %p145
      %p147 = scmp.ne.s32.totalorder %s139, %s142
      %p148 = scmp.eq.s32.totalorder %s19, 0
      %p149 = por %p147, %p148
      %p150 = scmp.ne.s32.totalorder %s139, %s142
      %p151 = scmp.eq.s32.totalorder %s24, 1
      %p152 = por %p150, %p151
      %p153 = scmp.ne.s32.totalorder %s142, %s143
      %p154 = scmp.eq.s32.totalorder %s24, 0
      %p155 = por %p153, %p154
      %p156 = scmp.ne.s32.totalorder %s142, %s143
      %p157 = scmp.eq.s32.totalorder %s25, 1
      %p158 = por %p156, %p157
      %p160 = scmp.ne.s32.totalorder %s143, %s159
      %p161 = scmp.eq.s32.totalorder %s25, 0
      %p162 = por %p160, %p161
      %p163 = scmp.le.s32.totalorder 1, %s19
      %p164 = scmp.lt.s32.totalorder %s19, 3
      %p165 = pnand %p163, %p164
      %p166 = pneg %p165
      // Predicated region
      $region9: #{tpu_custom_call.1} parent=5 // pred_check
        _
      $region10: #{tpu_custom_call.1} parent=5 // pred_check_branch
        %168 = sbr.rel (%p165) target = $region12
      $region11: #{tpu_custom_call.1} parent=5 // pred_region
        %s169 = ssub.s32 %s19, 1
        // Predicated region
        $region13: #{tpu_custom_call.1} parent=11 // pred_check
          %p170 = pneg %p66
        $region14: #{tpu_custom_call.1} parent=11 // pred_check_branch
          %172 = sbr.rel (%p170) target = $region16
        $region15: #{tpu_custom_call.1} parent=11 // pred_region
          %s174 = ssub.s32 3072, 3072
          %175 = vsyncadd [#allocation6], %s174
          %s176 = sshll.u32 [#allocation5], 4
          %s177 = int_to_ptr.vmem [resolvable:$true] %s176
          %182 = dma.hbm_to_vmem [thread:$0]  %s1, 3072, %s177, [#allocation6], 128, 128, 8
        $region16: #{tpu_custom_call.1} parent=11 // pred_fallthru
          _
        // Predicated region
        $region17: #{tpu_custom_call.1} parent=11 // pred_check
          %p183 = pneg %p87
        $region18: #{tpu_custom_call.1} parent=11 // pred_check_branch
          %185 = sbr.rel (%p183) target = $region20
        $region19: #{tpu_custom_call.1} parent=11 // pred_region
          _
        $region20: #{tpu_custom_call.1} parent=11 // pred_fallthru
          _
        // Predicated region
        $region21: #{tpu_custom_call.1} parent=11 // pred_check
          %p186 = pneg %p108
        $region22: #{tpu_custom_call.1} parent=11 // pred_check_branch
          %188 = sbr.rel (%p186) target = $region24
        $region23: #{tpu_custom_call.1} parent=11 // pred_region
          %s190 = ssub.s32 6144, 6144
          %191 = vsyncadd [#allocation6], %s190
          %s192 = sshll.u32 [#allocation7], 4
          %s193 = int_to_ptr.vmem [resolvable:$true] %s192
          %198 = dma.hbm_to_vmem [thread:$0]  %s3, 6144, %s193, [#allocation6], 384, 384, 24
        $region24: #{tpu_custom_call.1} parent=11 // pred_fallthru
          _
        // Predicated region
        $region25: #{tpu_custom_call.1} parent=11 // pred_check
          %p199 = pneg %p129
        $region26: #{tpu_custom_call.1} parent=11 // pred_check_branch
          %201 = sbr.rel (%p199) target = $region28
        $region27: #{tpu_custom_call.1} parent=11 // pred_region
          %s203 = ssub.s32 384, 384
          %204 = vsyncadd [#allocation9], %s203
          %s206 = sshll.u32 [#allocation8], 4
          %s207 = int_to_ptr.vmem [resolvable:$true] %s206
          %209 = dma.hbm_to_vmem [thread:$0]  %s4, 384, %s207, [#allocation9]
        $region28: #{tpu_custom_call.1} parent=11 // pred_fallthru
          _
      $region12: #{tpu_custom_call.1} parent=5 // pred_fallthru
        _
      %p210 = scmp.lt.s32.totalorder %s19, 2
      // Predicated region
      $region29: #{tpu_custom_call.1} parent=5 // pred_check
        %p211 = pneg %p210
      $region30: #{tpu_custom_call.1} parent=5 // pred_check_branch
        %213 = sbr.rel (%p211) target = $region32
      $region31: #{tpu_custom_call.1} parent=5 // pred_region
        // Predicated region
        $region33: #{tpu_custom_call.1} parent=31 // pred_check
          %p214 = pneg %p39
        $region34: #{tpu_custom_call.1} parent=31 // pred_check_branch
          %216 = sbr.rel (%p214) target = $region36
        $region35: #{tpu_custom_call.1} parent=31 // pred_region
          %s217 = sand.u32 %s29, 1
          %s218 = scalar_lea.sflag [#allocation3], %s217
          %s219 = sand.u32 %s29, 1
          %s220 = smul.addr %s219, 16
          %s221 = scalar_lea.vmem [#allocation2], %s220
          %s223 = ssub.s32 256, 256
          %224 = vsyncadd %s218, %s223
          %s225 = smul.addr %s19, 2
          %s226 = smul.addr %s225, 128
          %s227 = scalar_lea.hbm %s0, %s226
          %s228 = sshll.u32 %s221, 4
          %s229 = int_to_ptr.vmem [resolvable:$true] %s228
          %234 = dma.hbm_to_vmem [thread:$0]  %s227, 256, %s229, %s218, 128, 128, 8
        $region36: #{tpu_custom_call.1} parent=31 // pred_fallthru
          _
      $region32: #{tpu_custom_call.1} parent=5 // pred_fallthru
        _
      %p235 = scmp.le.s32.totalorder 1, %s19
      %p236 = scmp.lt.s32.totalorder %s19, 3
      %p237 = pnand %p235, %p236
      %p238 = pneg %p237
      // Predicated region
      $region37: #{tpu_custom_call.1} parent=5 // pred_check
        _
      $region38: #{tpu_custom_call.1} parent=5 // pred_check_branch
        %240 = sbr.rel (%p237) target = $region40
      $region39: #{tpu_custom_call.1} parent=5 // pred_region
        %s241 = ssub.s32 %s19, 1
        %s242 = sand.u32 %s32, 1
        %s243 = scalar_lea.sflag [#allocation3], %s242
        %s244 = sand.u32 %s32, 1
        %s245 = smul.addr %s244, 16
        %s246 = scalar_lea.vmem [#allocation2], %s245
        // Predicated region
        $region41: #{tpu_custom_call.1} parent=39 // pred_check
          %p247 = pneg %p45
        $region42: #{tpu_custom_call.1} parent=39 // pred_check_branch
          %249 = sbr.rel (%p247) target = $region44
        $region43: #{tpu_custom_call.1} parent=39 // pred_region
          %250 = dma.done %s243, 256
        $region44: #{tpu_custom_call.1} parent=39 // pred_fallthru
          _
        // Predicated region
        $region45: #{tpu_custom_call.1} parent=39 // pred_check
          %p251 = pneg %p66
        $region46: #{tpu_custom_call.1} parent=39 // pred_check_branch
          %253 = sbr.rel (%p251) target = $region48
        $region47: #{tpu_custom_call.1} parent=39 // pred_region
          %254 = dma.done [#allocation6], 3072
        $region48: #{tpu_custom_call.1} parent=39 // pred_fallthru
          _
        // Predicated region
        $region49: #{tpu_custom_call.1} parent=39 // pred_check
          %p255 = pneg %p108
        $region50: #{tpu_custom_call.1} parent=39 // pred_check_branch
          %257 = sbr.rel (%p255) target = $region52
        $region51: #{tpu_custom_call.1} parent=39 // pred_region
          %258 = dma.done [#allocation6], 6144
        $region52: #{tpu_custom_call.1} parent=39 // pred_fallthru
          _
        // Predicated region
        $region53: #{tpu_custom_call.1} parent=39 // pred_check
          %p259 = pneg %p129
        $region54: #{tpu_custom_call.1} parent=39 // pred_check_branch
          %261 = sbr.rel (%p259) target = $region56
        $region55: #{tpu_custom_call.1} parent=39 // pred_region
          %262 = dma.done [#allocation9], 384
        $region56: #{tpu_custom_call.1} parent=39 // pred_fallthru
          _
        %s263 = sand.u32 %s32, 1
        %s264 = scalar_lea.sflag [#allocation3], %s263
        %s265 = sand.u32 %s32, 1
        %s266 = smul.addr %s265, 16
        %s267 = scalar_lea.vmem [#allocation2], %s266
        %p268 = pneg %p45
        %p269 = pneg %p42
        %p270 = pneg %p66
        %p271 = pneg %p63
        %p272 = pneg %p87
        %p273 = pneg %p84
        %p274 = pneg %p108
        %p275 = pneg %p105
        %p276 = pneg %p129
        %p277 = pneg %p126
        %p278 = pneg %p155
        %p279 = pneg %p152
        %s280 = sand.u32 %s142, 1
        %s281 = scalar_lea.sflag [#allocation4], %s280
        %s282 = sand.u32 %s142, 1
        %s283 = smul.addr %s282, 48
        %s284 = scalar_lea.vmem [#allocation10], %s283
        %v285 = vld [vmem:[%s246] sm:$0xff]
        %v286 = vld [vmem:[%s246 + $0x8] sm:$0xff]
        %vm289 = vcmask 1040384
        %v290 = vrot.slane %v285, 7
        %v291 = vrot.slane %v286, 7
        %v292 = vsel %vm289, %v290, %v291
        %v296 = vsel %vm289, 0.0, %v290
        %v297 = vsel %vm289, %v291, 0.0
        %vm300 = vcmask 1046528
        %v301 = vrot.slane %v296, 1
        %v302 = vrot.slane %v292, 1
        %v303 = vsel %vm300, %v301, %v302
        %v304 = vrot.slane %v297, 1
        %v305 = vsel %vm300, %v302, %v304
        %306 = vrot.lane.b32.xlu0 %v303, 64
        %v307 = vpop.permute.xlu0 %306
        %308 = vrot.lane.b32.xlu0 %v305, 64
        %v309 = vpop.permute.xlu0 %308
        %vm312 = vcmask 1045504
        %v313 = vrot.slane %v296, 2
        %v314 = vrot.slane %v292, 2
        %v315 = vsel %vm312, %v313, %v314
        %v316 = vrot.slane %v297, 2
        %v317 = vsel %vm312, %v314, %v316
        %vm318 = vcmask 523264
        %v319 = vsel %vm318, %v296, %v307
        %v320 = vsel %vm318, %v292, %v309
        %v321 = vld [vmem:[#allocation5] sm:$0xff]
        %v322 = vld [vmem:[#allocation5 + $0x8] sm:$0xff]
        %v323 = vld [vmem:[#allocation5 + $0x10] sm:$0xff]
        %v324 = vld [vmem:[#allocation5 + $0x18] sm:$0xff]
        %v325 = vld [vmem:[#allocation5 + $0x20] sm:$0xff]
        %v326 = vld [vmem:[#allocation5 + $0x28] sm:$0xff]
        %v327 = vld [vmem:[#allocation5 + $0x30] sm:$0xff]
        %v328 = vld [vmem:[#allocation5 + $0x38] sm:$0xff]
        %v329 = vld [vmem:[#allocation5 + $0x40] sm:$0xff]
        %v330 = vld [vmem:[#allocation5 + $0x48] sm:$0xff]
        %v331 = vld [vmem:[#allocation5 + $0x50] sm:$0xff]
        %v332 = vld [vmem:[#allocation5 + $0x58] sm:$0xff]
        %v333 = vld [vmem:[#allocation5 + $0x60] sm:$0xff]
        %v334 = vld [vmem:[#allocation5 + $0x68] sm:$0xff]
        %v335 = vld [vmem:[#allocation5 + $0x70] sm:$0xff]
        %v336 = vld [vmem:[#allocation5 + $0x78] sm:$0xff]
        %v337 = vld [vmem:[#allocation5 + $0x80] sm:$0xff]
        %v338 = vld [vmem:[#allocation5 + $0x88] sm:$0xff]
        %v339 = vld [vmem:[#allocation5 + $0x90] sm:$0xff]
        %v340 = vld [vmem:[#allocation5 + $0x98] sm:$0xff]
        %v341 = vld [vmem:[#allocation5 + $0xa0] sm:$0xff]
        %v342 = vld [vmem:[#allocation5 + $0xa8] sm:$0xff]
        %v343 = vld [vmem:[#allocation5 + $0xb0] sm:$0xff]
        %v344 = vld [vmem:[#allocation5 + $0xb8] sm:$0xff]
        %v345 = vld [vmem:[%s2] sm:$0x1]
        %v347 = vlaneseq
        %v348 = vshrl.u32 %v347, 7
        %v349 = vsub.s32 0, %v348
        %v350 = vrot.slane %v345, %v349
        %v352 = vsel %vm318, %v315, 0
        %v354 = vsel %vm318, %v317, 0
        %356 = vmatprep.subr.mxu0 0.0
        %357 = vmatpush1.msra.mxu0 %v321
        %358 = vmatprep.subr.mxu0 0.0
        %359 = vmatpush1.msra.mxu0 %v322
        %360 = vmatprep.subr.mxu0 0.0
        %361 = vmatpush1.msra.mxu0 %v323
        %362 = vmatprep.subr.mxu0 0.0
        %363 = vmatpush1.msra.mxu0 %v324
        %364 = vmatprep.subr.mxu0 0.0
        %365 = vmatpush1.msra.mxu0 %v325
        %366 = vmatprep.subr.mxu0 0.0
        %367 = vmatpush1.msra.mxu0 %v326
        %368 = vmatprep.subr.mxu0 0.0
        %369 = vmatpush1.msra.mxu0 %v327
        %370 = vmatprep.subr.mxu0 0.0
        %371 = vmatpush1.msra.mxu0 %v328
        %372 = vmatprep.subr.mxu0 0.0
        %373 = vmatpush1.msra.mxu0 %v329
        %374 = vmatprep.subr.mxu0 0.0
        %375 = vmatpush1.msra.mxu0 %v330
        %376 = vmatprep.subr.mxu0 0.0
        %377 = vmatpush1.msra.mxu0 %v331
        %378 = vmatprep.subr.mxu0 0.0
        %379 = vmatpush1.msra.mxu0 %v332
        %380 = vmatprep.subr.mxu0 0.0
        %381 = vmatpush1.msra.mxu0 %v333
        %382 = vmatprep.subr.mxu0 0.0
        %383 = vmatpush1.msra.mxu0 %v334
        %384 = vmatprep.subr.mxu0 0.0
        %385 = vmatpush1.msra.mxu0 %v335
        %386 = vmatprep.subr.mxu0 0.0
        %387 = vmatpush1.msra.mxu0 %v336
        %388 = vmatprep.subr.mxu0 0.0
        %389 = vmatpush1.msra.mxu0 %v337
        %390 = vmatprep.subr.mxu0 0.0
        %391 = vmatpush1.msra.mxu0 %v338
        %392 = vmatprep.subr.mxu0 0.0
        %393 = vmatpush1.msra.mxu0 %v339
        %394 = vmatprep.subr.mxu0 0.0
        %395 = vmatpush1.msra.mxu0 %v340
        %396 = vmatprep.subr.mxu0 0.0
        %397 = vmatpush1.msra.mxu0 %v341
        %398 = vmatprep.subr.mxu0 0.0
        %399 = vmatpush1.msra.mxu0 %v342
        %400 = vmatprep.subr.mxu0 0.0
        %401 = vmatpush1.msra.mxu0 %v343
        %402 = vmatprep.subr.mxu0 0.0
        %403 = vmatpush1.msra.mxu0 %v344
        %404 = vmatprep.subr.mxu0 0.0
        %405 = vmatpush1.msra.mxu0 0.0
        %406 = vmatprep.subr.mxu0 0.0
        %407 = vmatpush1.msra.mxu0 0.0
        %408 = vmatprep.subr.mxu0 0.0
        %409 = vmatpush1.msra.mxu0 0.0
        %410 = vmatprep.subr.mxu0 0.0
        %411 = vmatpush1.msra.mxu0 0.0
        %412 = vmatprep.subr.mxu0 0.0
        %413 = vmatpush1.msra.mxu0 0.0
        %414 = vmatprep.subr.mxu0 0.0
        %415 = vmatpush1.msra.mxu0 0.0
        %416 = vmatprep.subr.mxu0 0.0
        %417 = vmatpush1.msra.mxu0 0.0
        %418 = vmatprep.subr.mxu0 0.0
        %419 = vmatpush1.msra.mxu0 0.0
        %420 = vmatprep.mubr.f32.mxu0 %v352
        %421 = vmatmul.mubr.f32.gmra.mrb[0].mxu0 %v319
        %v422 = vpop.f32.mrb[0].mxu0
        %v423 = vadd.f32 %v350, %v422
        %v424 = vpop.f32.mrb[0].mxu0
        %425 = vmatprep.mubr.f32.mxu0 %v354
        %426 = vmatmul.mubr.f32.gmra.mrb[0].mxu0 %v320
        %v427 = vpop.f32.mrb[0].mxu0
        %v428 = vadd.f32 %v350, %v427
        %v429 = vpop.f32.mrb[0].mxu0
        %430 = vdwg.mxu0
        %vm431 = vcmp.ge.f32.partialorder %v423, 0.0
        %vm432 = vcmp.ge.f32.partialorder %v428, 0.0
        %v433 = vmul.f32 %v423, 0.01
        %v434 = vmul.f32 %v428, 0.01
        %v435 = vsel %vm431, %v423, %v433
        %v436 = vsel %vm432, %v428, %v434
        %v437 = vld [vmem:[#allocation7] sm:$0xff]
        %v438 = vld [vmem:[#allocation7 + $0x8] sm:$0xff]
        %v439 = vld [vmem:[#allocation7 + $0x10] sm:$0xff]
        %v440 = vld [vmem:[#allocation7 + $0x18] sm:$0xff]
        %v441 = vld [vmem:[#allocation7 + $0x20] sm:$0xff]
        %v442 = vld [vmem:[#allocation7 + $0x28] sm:$0xff]
        %v443 = vld [vmem:[#allocation7 + $0x30] sm:$0xff]
        %v444 = vld [vmem:[#allocation7 + $0x38] sm:$0xff]
        %v445 = vld [vmem:[#allocation7 + $0x40] sm:$0xff]
        %v446 = vld [vmem:[#allocation7 + $0x48] sm:$0xff]
        %v447 = vld [vmem:[#allocation7 + $0x50] sm:$0xff]
        %v448 = vld [vmem:[#allocation7 + $0x58] sm:$0xff]
        %v449 = vld [vmem:[#allocation7 + $0x60] sm:$0xff]
        %v450 = vld [vmem:[#allocation7 + $0x68] sm:$0xff]
        %v451 = vld [vmem:[#allocation7 + $0x70] sm:$0xff]
        %v452 = vld [vmem:[#allocation7 + $0x78] sm:$0xff]
        %v453 = vld [vmem:[#allocation7 + $0x80] sm:$0xff]
        %v454 = vld [vmem:[#allocation7 + $0x88] sm:$0xff]
        %v455 = vld [vmem:[#allocation7 + $0x90] sm:$0xff]
        %v456 = vld [vmem:[#allocation7 + $0x98] sm:$0xff]
        %v457 = vld [vmem:[#allocation7 + $0xa0] sm:$0xff]
        %v458 = vld [vmem:[#allocation7 + $0xa8] sm:$0xff]
        %v459 = vld [vmem:[#allocation7 + $0xb0] sm:$0xff]
        %v460 = vld [vmem:[#allocation7 + $0xb8] sm:$0xff]
        %v461 = vld [vmem:[#allocation7 + $0xc0] sm:$0xff]
        %v462 = vld [vmem:[#allocation7 + $0xc8] sm:$0xff]
        %v463 = vld [vmem:[#allocation7 + $0xd0] sm:$0xff]
        %v464 = vld [vmem:[#allocation7 + $0xd8] sm:$0xff]
        %v465 = vld [vmem:[#allocation7 + $0xe0] sm:$0xff]
        %v466 = vld [vmem:[#allocation7 + $0xe8] sm:$0xff]
        %v467 = vld [vmem:[#allocation7 + $0xf0] sm:$0xff]
        %v468 = vld [vmem:[#allocation7 + $0xf8] sm:$0xff]
        %v469 = vld [vmem:[#allocation7 + $0x100] sm:$0xff]
        %v470 = vld [vmem:[#allocation7 + $0x108] sm:$0xff]
        %v471 = vld [vmem:[#allocation7 + $0x110] sm:$0xff]
        %v472 = vld [vmem:[#allocation7 + $0x118] sm:$0xff]
        %v473 = vld [vmem:[#allocation7 + $0x120] sm:$0xff]
        %v474 = vld [vmem:[#allocation7 + $0x128] sm:$0xff]
        %v475 = vld [vmem:[#allocation7 + $0x130] sm:$0xff]
        %v476 = vld [vmem:[#allocation7 + $0x138] sm:$0xff]
        %v477 = vld [vmem:[#allocation7 + $0x140] sm:$0xff]
        %v478 = vld [vmem:[#allocation7 + $0x148] sm:$0xff]
        %v479 = vld [vmem:[#allocation7 + $0x150] sm:$0xff]
        %v480 = vld [vmem:[#allocation7 + $0x158] sm:$0xff]
        %v481 = vld [vmem:[#allocation7 + $0x160] sm:$0xff]
        %v482 = vld [vmem:[#allocation7 + $0x168] sm:$0xff]
        %v483 = vld [vmem:[#allocation7 + $0x170] sm:$0xff]
        %v484 = vld [vmem:[#allocation7 + $0x178] sm:$0xff]
        %v485 = vld [vmem:[#allocation8] ss:$8 sm:$0x7]
        %v487 = vlaneseq
        %v488 = vshrl.u32 %v487, 7
        %v489 = vsub.s32 0, %v488
        %v490 = vrot.slane %v485, %v489
        %v491 = vlaneseq
        %v492 = vshrl.u32 %v491, 7
        %v493 = vsub.s32 1, %v492
        %v494 = vrot.slane %v485, %v493
        %v495 = vlaneseq
        %v496 = vshrl.u32 %v495, 7
        %v497 = vsub.s32 2, %v496
        %v498 = vrot.slane %v485, %v497
        %502 = vmatprep.subr.mxu0 %v438
        %503 = vmatpush1.msra.mxu0 %v437
        %504 = vmatprep.subr.mxu0 %v441
        %505 = vmatpush1.msra.mxu0 %v440
        %506 = vmatprep.subr.mxu0 %v444
        %507 = vmatpush1.msra.mxu0 %v443
        %508 = vmatprep.subr.mxu0 %v447
        %509 = vmatpush1.msra.mxu0 %v446
        %510 = vmatprep.subr.mxu0 %v450
        %511 = vmatpush1.msra.mxu0 %v449
        %512 = vmatprep.subr.mxu0 %v453
        %513 = vmatpush1.msra.mxu0 %v452
        %514 = vmatprep.subr.mxu0 %v456
        %515 = vmatpush1.msra.mxu0 %v455
        %516 = vmatprep.subr.mxu0 %v459
        %517 = vmatpush1.msra.mxu0 %v458
        %518 = vmatprep.subr.mxu0 %v462
        %519 = vmatpush1.msra.mxu0 %v461
        %520 = vmatprep.subr.mxu0 %v465
        %521 = vmatpush1.msra.mxu0 %v464
        %522 = vmatprep.subr.mxu0 %v468
        %523 = vmatpush1.msra.mxu0 %v467
        %524 = vmatprep.subr.mxu0 %v471
        %525 = vmatpush1.msra.mxu0 %v470
        %526 = vmatprep.subr.mxu0 %v474
        %527 = vmatpush1.msra.mxu0 %v473
        %528 = vmatprep.subr.mxu0 %v477
        %529 = vmatpush1.msra.mxu0 %v476
        %530 = vmatprep.subr.mxu0 %v480
        %531 = vmatpush1.msra.mxu0 %v479
        %532 = vmatprep.subr.mxu0 %v483
        %533 = vmatpush1.msra.mxu0 %v482
        %534 = vmatprep.subr.mxu0 0.0
        %535 = vmatpush1.msra.mxu0 0.0
        %536 = vmatprep.subr.mxu0 0.0
        %537 = vmatpush1.msra.mxu0 0.0
        %538 = vmatprep.subr.mxu0 0.0
        %539 = vmatpush1.msra.mxu0 0.0
        %540 = vmatprep.subr.mxu0 0.0
        %541 = vmatpush1.msra.mxu0 0.0
        %542 = vmatprep.subr.mxu0 0.0
        %543 = vmatpush1.msra.mxu0 0.0
        %544 = vmatprep.subr.mxu0 0.0
        %545 = vmatpush1.msra.mxu0 0.0
        %546 = vmatprep.subr.mxu0 0.0
        %547 = vmatpush1.msra.mxu0 0.0
        %548 = vmatprep.subr.mxu0 0.0
        %549 = vmatpush1.msra.mxu0 0.0
        %550 = vmatprep.subr.mxu0 0.0
        %551 = vmatpush1.msra.mxu0 0.0
        %552 = vmatprep.subr.mxu0 0.0
        %553 = vmatpush1.msra.mxu0 0.0
        %554 = vmatprep.subr.mxu0 0.0
        %555 = vmatpush1.msra.mxu0 0.0
        %556 = vmatprep.subr.mxu0 0.0
        %557 = vmatpush1.msra.mxu0 0.0
        %558 = vmatprep.subr.mxu0 0.0
        %559 = vmatpush1.msra.mxu0 0.0
        %560 = vmatprep.subr.mxu0 0.0
        %561 = vmatpush1.msra.mxu0 0.0
        %562 = vmatprep.subr.mxu0 0.0
        %563 = vmatpush1.msra.mxu0 0.0
        %564 = vmatprep.subr.mxu0 0.0
        %565 = vmatpush1.msra.mxu0 0.0
        %566 = vmatprep.mubr.f32.mxu0 0.0
        %567 = vmatmul.mubr.f32.gmra.mrb[0].mxu0 %v435
        %v568 = vpop.f32.mrb[0].mxu0
        %v569 = vadd.f32 %v490, %v568
        %v570 = vpop.f32.mrb[0].mxu0
        %v571 = vadd.f32 %v494, %v570
        %572 = vmatprep.mubr.f32.mxu0 0.0
        %573 = vmatmul.mubr.f32.gmra.mrb[0].mxu0 %v436
        %v574 = vpop.f32.mrb[0].mxu0
        %v575 = vadd.f32 %v490, %v574
        %v576 = vpop.f32.mrb[0].mxu0
        %v577 = vadd.f32 %v494, %v576
        %578 = vdwg.mxu0
        %579 = vmatprep.subr.mxu0 0.0
        %580 = vmatpush1.msra.mxu0 %v439
        %581 = vmatprep.subr.mxu0 0.0
        %582 = vmatpush1.msra.mxu0 %v442
        %583 = vmatprep.subr.mxu0 0.0
        %584 = vmatpush1.msra.mxu0 %v445
        %585 = vmatprep.subr.mxu0 0.0
        %586 = vmatpush1.msra.mxu0 %v448
        %587 = vmatprep.subr.mxu0 0.0
        %588 = vmatpush1.msra.mxu0 %v451
        %589 = vmatprep.subr.mxu0 0.0
        %590 = vmatpush1.msra.mxu0 %v454
        %591 = vmatprep.subr.mxu0 0.0
        %592 = vmatpush1.msra.mxu0 %v457
        %593 = vmatprep.subr.mxu0 0.0
        %594 = vmatpush1.msra.mxu0 %v460
        %595 = vmatprep.subr.mxu0 0.0
        %596 = vmatpush1.msra.mxu0 %v463
        %597 = vmatprep.subr.mxu0 0.0
        %598 = vmatpush1.msra.mxu0 %v466
        %599 = vmatprep.subr.mxu0 0.0
        %600 = vmatpush1.msra.mxu0 %v469
        %601 = vmatprep.subr.mxu0 0.0
        %602 = vmatpush1.msra.mxu0 %v472
        %603 = vmatprep.subr.mxu0 0.0
        %604 = vmatpush1.msra.mxu0 %v475
        %605 = vmatprep.subr.mxu0 0.0
        %606 = vmatpush1.msra.mxu0 %v478
        %607 = vmatprep.subr.mxu0 0.0
        %608 = vmatpush1.msra.mxu0 %v481
        %609 = vmatprep.subr.mxu0 0.0
        %610 = vmatpush1.msra.mxu0 %v484
        %611 = vmatprep.subr.mxu0 0.0
        %612 = vmatpush1.msra.mxu0 0.0
        %613 = vmatprep.subr.mxu0 0.0
        %614 = vmatpush1.msra.mxu0 0.0
        %615 = vmatprep.subr.mxu0 0.0
        %616 = vmatpush1.msra.mxu0 0.0
        %617 = vmatprep.subr.mxu0 0.0
        %618 = vmatpush1.msra.mxu0 0.0
        %619 = vmatprep.subr.mxu0 0.0
        %620 = vmatpush1.msra.mxu0 0.0
        %621 = vmatprep.subr.mxu0 0.0
        %622 = vmatpush1.msra.mxu0 0.0
        %623 = vmatprep.subr.mxu0 0.0
        %624 = vmatpush1.msra.mxu0 0.0
        %625 = vmatprep.subr.mxu0 0.0
        %626 = vmatpush1.msra.mxu0 0.0
        %627 = vmatprep.subr.mxu0 0.0
        %628 = vmatpush1.msra.mxu0 0.0
        %629 = vmatprep.subr.mxu0 0.0
        %630 = vmatpush1.msra.mxu0 0.0
        %631 = vmatprep.subr.mxu0 0.0
        %632 = vmatpush1.msra.mxu0 0.0
        %633 = vmatprep.subr.mxu0 0.0
        %634 = vmatpush1.msra.mxu0 0.0
        %635 = vmatprep.subr.mxu0 0.0
        %636 = vmatpush1.msra.mxu0 0.0
        %637 = vmatprep.subr.mxu0 0.0
        %638 = vmatpush1.msra.mxu0 0.0
        %639 = vmatprep.subr.mxu0 0.0
        %640 = vmatpush1.msra.mxu0 0.0
        %641 = vmatprep.subr.mxu0 0.0
        %642 = vmatpush1.msra.mxu0 0.0
        %643 = vmatprep.mubr.f32.mxu0 0.0
        %644 = vmatmul.mubr.f32.gmra.mrb[0].mxu0 %v435
        %v645 = vpop.f32.mrb[0].mxu0
        %v646 = vadd.f32 %v498, %v645
        %v647 = vpop.f32.mrb[0].mxu0
        %648 = vmatprep.mubr.f32.mxu0 0.0
        %649 = vmatmul.mubr.f32.gmra.mrb[0].mxu0 %v436
        %v650 = vpop.f32.mrb[0].mxu0
        %v651 = vadd.f32 %v498, %v650
        %v652 = vpop.f32.mrb[0].mxu0
        %653 = vdwg.mxu0
        %s654 = scalar_lea.vmem [#allocation8], 1
        %v655 = vld [vmem:[%s654] ss:$8 sm:$0x7]
        %s656 = scalar_lea.vmem [#allocation8], 2
        %v657 = vld [vmem:[%s656] ss:$8 sm:$0x7]
        %s658 = scalar_lea.vmem [#allocation8], 3
        %v659 = vld [vmem:[%s658] ss:$8 sm:$0x7]
        %s660 = scalar_lea.vmem [#allocation8], 4
        %v661 = vld [vmem:[%s660] ss:$8 sm:$0x7]
        %v662 = vsub.f32 0.0, %v569
        %v663 = vsub.f32 0.0, %v571
        %v664 = vsub.f32 0.0, %v646
        %v665 = vsub.f32 0.0, %v575
        %v666 = vsub.f32 0.0, %v577
        %v667 = vsub.f32 0.0, %v651
        %v668 = vmul.f32 %v662, 1.442695
        %v669 = vpow.pop %v668
        %v670 = vmul.f32 %v663, 1.442695
        %v671 = vpow.pop %v670
        %v672 = vmul.f32 %v664, 1.442695
        %v673 = vpow.pop %v672
        %v674 = vmul.f32 %v665, 1.442695
        %v675 = vpow.pop %v674
        %v676 = vmul.f32 %v666, 1.442695
        %v677 = vpow.pop %v676
        %v678 = vmul.f32 %v667, 1.442695
        %v679 = vpow.pop %v678
        %v680 = vadd.f32 %v669, 1.0
        %v681 = vadd.f32 %v671, 1.0
        %v682 = vadd.f32 %v673, 1.0
        %v683 = vadd.f32 %v675, 1.0
        %v684 = vadd.f32 %v677, 1.0
        %v685 = vadd.f32 %v679, 1.0
        %v686 = vrcp.pop %v680
        %v687 = vrcp.pop %v681
        %v688 = vrcp.pop %v682
        %v689 = vrcp.pop %v683
        %v690 = vrcp.pop %v684
        %v691 = vrcp.pop %v685
        %v692 = vrcp.pop %v669
        %v693 = vrcp.pop %v671
        %v694 = vrcp.pop %v673
        %v695 = vrcp.pop %v675
        %v696 = vrcp.pop %v677
        %v697 = vrcp.pop %v679
        %vm698 = vcmp.gt.f32.partialorder %v655, 0.5
        %v700 = vlaneseq
        %v701 = vshrl.u32 %v700, 7
        %v702 = vsub.s32 0, %v701
        %v703 = vrot.slane %v661, %v702
        %v704 = vlaneseq
        %v705 = vshrl.u32 %v704, 7
        %v706 = vsub.s32 1, %v705
        %v707 = vrot.slane %v661, %v706
        %v708 = vlaneseq
        %v709 = vshrl.u32 %v708, 7
        %v710 = vsub.s32 2, %v709
        %v711 = vrot.slane %v661, %v710
        %v715 = vmul.f32 %v692, %v703
        %v716 = vmul.f32 %v693, %v707
        %v717 = vmul.f32 %v694, %v711
        %v718 = vmul.f32 %v695, %v703
        %v719 = vmul.f32 %v696, %v707
        %v720 = vmul.f32 %v697, %v711
        %v722 = vlaneseq
        %v723 = vshrl.u32 %v722, 7
        %v724 = vsub.s32 0, %v723
        %v725 = vrot.slane %v657, %v724
        %v726 = vlaneseq
        %v727 = vshrl.u32 %v726, 7
        %v728 = vsub.s32 1, %v727
        %v729 = vrot.slane %v657, %v728
        %v730 = vlaneseq
        %v731 = vshrl.u32 %v730, 7
        %v732 = vsub.s32 2, %v731
        %v733 = vrot.slane %v657, %v732
        %v737 = vmul.f32 %v686, %v725
        %v738 = vmul.f32 %v687, %v729
        %v739 = vmul.f32 %v688, %v733
        %v740 = vmul.f32 %v689, %v725
        %v741 = vmul.f32 %v690, %v729
        %v742 = vmul.f32 %v691, %v733
        %v744 = vlaneseq
        %v745 = vshrl.u32 %v744, 7
        %v746 = vsub.s32 0, %v745
        %v747 = vrot.slane %v659, %v746
        %v748 = vlaneseq
        %v749 = vshrl.u32 %v748, 7
        %v750 = vsub.s32 1, %v749
        %v751 = vrot.slane %v659, %v750
        %v752 = vlaneseq
        %v753 = vshrl.u32 %v752, 7
        %v754 = vsub.s32 2, %v753
        %v755 = vrot.slane %v659, %v754
        %v759 = vadd.f32 %v737, %v747
        %v760 = vadd.f32 %v738, %v751
        %v761 = vadd.f32 %v739, %v755
        %v762 = vadd.f32 %v740, %v747
        %v763 = vadd.f32 %v741, %v751
        %v764 = vadd.f32 %v742, %v755
        %v765 = vsel %vm698, 1, 0
        %v766 = vlaneseq
        %v767 = vshrl.u32 %v766, 7
        %v768 = vsub.s32 0, %v767
        %v769 = vrot.slane %v765, %v768
        %v770 = vlaneseq
        %v771 = vshrl.u32 %v770, 7
        %v772 = vsub.s32 1, %v771
        %v773 = vrot.slane %v765, %v772
        %v774 = vlaneseq
        %v775 = vshrl.u32 %v774, 7
        %v776 = vsub.s32 2, %v775
        %v777 = vrot.slane %v765, %v776
        %vm778 = vcmp.eq.s32.totalorder %v769, 1
        %vm779 = vcmp.eq.s32.totalorder %v773, 1
        %vm780 = vcmp.eq.s32.totalorder %v777, 1
        %v781 = vsel %vm778, %v715, %v759
        %v782 = vsel %vm779, %v716, %v760
        %v783 = vsel %vm780, %v717, %v761
        %v784 = vsel %vm778, %v718, %v762
        %v785 = vsel %vm779, %v719, %v763
        %v786 = vsel %vm780, %v720, %v764
        %787 = vst [vmem:[%s284] sm:$0xff] %v781
        %788 = vst [vmem:[%s284 + $0x8] sm:$0xff] %v782
        %789 = vst [vmem:[%s284 + $0x10] sm:$0xff] %v783
        %790 = vst [vmem:[%s284 + $0x18] sm:$0xff] %v784
        %791 = vst [vmem:[%s284 + $0x20] sm:$0xff] %v785
        %792 = vst [vmem:[%s284 + $0x28] sm:$0xff] %v786
        %s793 = sand.u32 %s142, 1
        %s794 = scalar_lea.sflag [#allocation4], %s793
        %s795 = sand.u32 %s142, 1
        %s796 = smul.addr %s795, 48
        %s797 = scalar_lea.vmem [#allocation10], %s796
        // Predicated region
        $region57: #{tpu_custom_call.1} parent=39 // pred_check
          %p798 = pneg %p152
        $region58: #{tpu_custom_call.1} parent=39 // pred_check_branch
          %800 = sbr.rel (%p798) target = $region60
        $region59: #{tpu_custom_call.1} parent=39 // pred_region
          %s802 = ssub.s32 768, 768
          %803 = vsyncadd %s794, %s802
          %s804 = smul.addr %s24, 6
          %s805 = smul.addr %s804, 128
          %s806 = scalar_lea.hbm %s5, %s805
          %s807 = sshll.u32 %s797, 4
          %s808 = int_to_ptr.vmem [resolvable:$true] %s807
          %813 = dma.vmem_to_hbm [thread:$0]  %s808, 768, %s806, %s794, 384, 384, 24
        $region60: #{tpu_custom_call.1} parent=39 // pred_fallthru
          _
      $region40: #{tpu_custom_call.1} parent=5 // pred_fallthru
        _
      %p814 = scmp.le.s32.totalorder 2, %s19
      // Predicated region
      $region61: #{tpu_custom_call.1} parent=5 // pred_check
        %p815 = pneg %p814
      $region62: #{tpu_custom_call.1} parent=5 // pred_check_branch
        %817 = sbr.rel (%p815) target = $region64
      $region63: #{tpu_custom_call.1} parent=5 // pred_region
        %s818 = ssub.s32 %s19, 2
        // Predicated region
        $region65: #{tpu_custom_call.1} parent=63 // pred_check
          %p819 = pneg %p158
        $region66: #{tpu_custom_call.1} parent=63 // pred_check_branch
          %821 = sbr.rel (%p819) target = $region68
        $region67: #{tpu_custom_call.1} parent=63 // pred_region
          %s822 = sand.u32 %s143, 1
          %s823 = scalar_lea.sflag [#allocation4], %s822
          %s824 = sand.u32 %s143, 1
          %s825 = smul.addr %s824, 48
          %s826 = scalar_lea.vmem [#allocation10], %s825
          %827 = dma.done %s823, 768
        $region68: #{tpu_custom_call.1} parent=63 // pred_fallthru
          _
      $region64: #{tpu_custom_call.1} parent=5 // pred_fallthru
        _
    $region6: #{tpu_custom_call.1} parent=1 // loop_footer
      %s23 = sadd.s32 1, %s19
    $region7: #{tpu_custom_call.1} parent=1 // loop_footer_branch
      %18 = sbr.rel target = $region3
    $region8: #{tpu_custom_call.1} parent=1 // loop_exit
      _
    %828 = vsyncpa [#allocation3], 1
    %s829 = scalar_lea.sflag [#allocation3], 1
    %830 = vsyncpa %s829, 1
    %831 = vsyncpa [#allocation6], 1
    %832 = vsyncpa [#allocation9], 1
    %833 = vsyncpa [#allocation4], 1
    %s834 = scalar_lea.sflag [#allocation4], 1
    %835 = vsyncpa %s834, 1

</llo_original>
